<compile_context>
chip_gen: v6e
topology: v6e:2x2x1
jax: 0.10.0
libtpu: 0.0.40
codegen_flags: <defaults>
</compile_context>

<pallas_src>
import numpy as np
import jax
import jax.numpy as jnp
from jax.experimental import pallas as pl
from jax.experimental.pallas import tpu as pltpu


# --------------------------------------------------------------------------
# Recurrent kernel: one attention + LSTMCell step per grid iteration.
# h/c live in VMEM scratch and persist across the sequential ("arbitrary") grid.
# --------------------------------------------------------------------------
def decoder_step_kernel(
    features_ref,            # (B, N, De)   resident
    u_hs_ref,                # (B, N, A)    resident (precomputed features @ U + b)
    embg_ref,                # (1, B, 4Dd)  per-step: embeds[s] @ W_ih[:E] + b_ih + b_hh
    h0_ref, c0_ref,          # (B, Dd)      resident initial states
    ww_ref, wb_ref,          # attention W  (Dd, A), (1, A)
    aw_ref, ab_ref,          # attention A  (1, A), (1, 1)
    wch_ref,                 # packed [W_ih[E:]; W_hh]  (De+Dd, 4Dd)
    h_seq_ref, alphas_ref,   # outputs (S, B, Dd) / (S, B, N), VMEM-resident
    h_ref, c_ref,            # scratch (B, Dd)
):
    s = pl.program_id(0)

    @pl.when(s == 0)
    def _init():
        h_ref[...] = h0_ref[...]
        c_ref[...] = c0_ref[...]

    feats = features_ref[...]                       # (B, N, De)
    h = h_ref[...]                                  # (B, Dd)
    c = c_ref[...]
    Dd = h.shape[-1]

    # ---------------- Attention (features @ U hoisted to the wrapper) -------
    w_ah = jnp.dot(h, ww_ref[...], preferred_element_type=jnp.float32) + wb_ref[...]
    combined = jnp.tanh(u_hs_ref[...] + w_ah[:, None, :])               # (B, N, A)
    # Lane reduce kept on VPU/XLU: it directly yields (B, N) lane-major for the
    # softmax; a matmul form would need a (B*N,1)->(B,N) relayout that costs more
    # at these sizes.
    scores = jnp.sum(combined * aw_ref[...][None, :, :], axis=-1) + ab_ref[...]  # (B, N)
    scores = scores - jnp.max(scores, axis=1, keepdims=True)
    e = jnp.exp(scores)
    alpha = e / jnp.sum(e, axis=1, keepdims=True)                       # softmax over N
    # Context as a batched MXU matmul instead of VPU mul + XLU sublane reduce.
    context = jnp.einsum('bqn,bnd->bqd', alpha[:, None, :], feats,
                         preferred_element_type=jnp.float32)[:, 0, :]   # (B, De)

    # ---------------- LSTMCell (PyTorch gate order i, f, g, o) --------------
    # Embedding contribution + both biases precomputed (batched) in the wrapper;
    # the remaining context/h matmuls are fused into a single MXU call.
    xh = jnp.concatenate([context, h], axis=-1)                         # (B, De+Dd)
    gates = embg_ref[0] + jnp.dot(xh, wch_ref[...],
                                  preferred_element_type=jnp.float32)   # (B, 4Dd)
    i_g = jax.nn.sigmoid(gates[:, 0 * Dd:1 * Dd])
    f_g = jax.nn.sigmoid(gates[:, 1 * Dd:2 * Dd])
    g_g = jnp.tanh(gates[:, 2 * Dd:3 * Dd])
    o_g = jax.nn.sigmoid(gates[:, 3 * Dd:4 * Dd])
    c_new = f_g * c + i_g * g_g
    h_new = o_g * jnp.tanh(c_new)
    h_ref[...] = h_new
    c_ref[...] = c_new

    # ---------------- Stage per-step outputs (single writeback at grid end) --
    h_seq_ref[s] = h_new
    alphas_ref[s] = alpha


# --------------------------------------------------------------------------
# Batched output projection kernel: preds = h_seq_flat @ fcn_w + fcn_b.
# (dropout = identity in eval mode)
# --------------------------------------------------------------------------
def fcn_matmul_kernel(h_ref, w_ref, b_ref, o_ref):
    o_ref[...] = (jnp.dot(h_ref[...], w_ref[...],
                          preferred_element_type=jnp.float32) + b_ref[...])


def _pick_tile(dim):
    for t in (512, 256, 128):
        if dim % t == 0:
            return t
    return dim   # small / ragged: use the full dim (always legal)


def fcn_project(h_flat, fcn_w, fcn_b):
    M, Dd = h_flat.shape
    V = fcn_w.shape[1]
    tm, tn = _pick_tile(M), _pick_tile(V)
    return pl.pallas_call(
        fcn_matmul_kernel,
        out_shape=jax.ShapeDtypeStruct((M, V), jnp.float32),
        grid_spec=pltpu.PrefetchScalarGridSpec(
            num_scalar_prefetch=0,
            grid=(M // tm, V // tn),
            in_specs=[pl.BlockSpec((tm, Dd), lambda i, j: (i, 0)),
                      pl.BlockSpec((Dd, tn), lambda i, j: (0, j)),
                      pl.BlockSpec((1, tn), lambda i, j: (0, j))],
            out_specs=pl.BlockSpec((tm, tn), lambda i, j: (i, j)),
        ),
        compiler_params=pltpu.CompilerParams(
            dimension_semantics=("parallel", "parallel")),
    )(h_flat, fcn_w, fcn_b)


# --------------------------------------------------------------------------
# Wrapper: loop-invariant precompute, recurrent pallas_call, batched projection.
# --------------------------------------------------------------------------
def decoder_forward(features, captions, params):
    B, N, De = features.shape
    T = captions.shape[1]
    S = T - 1
    emb_table = params["embedding"]
    Dd = params["whh"].shape[0]
    A_ = params["uw"].shape[1]
    V = params["fcn_w"].shape[1]

    # ---- loop-invariant precompute (hoisted out of the recurrent kernel) ----
    u_hs = jnp.einsum('bnd,da->bna', features, params["uw"]) + params["ub"]   # (B,N,A)
    mean_f = jnp.mean(features, axis=1)
    h0 = mean_f @ params["ihw"] + params["ihb"]                               # (B,Dd)
    c0 = mean_f @ params["icw"] + params["icb"]                               # (B,Dd)
    embeds = jnp.transpose(emb_table[captions[:, :S]], (1, 0, 2))             # (S,B,E)
    emb_gates = (jnp.einsum('sbe,eg->sbg', embeds, params["wih_e"])
                 + params["bih"] + params["bhh"])                             # (S,B,4Dd)
    w_ch = jnp.concatenate([params["wih_c"], params["whh"]], axis=0)          # (De+Dd,4Dd)

    grid_spec = pltpu.PrefetchScalarGridSpec(
        num_scalar_prefetch=0,
        grid=(S,),
        in_specs=[
            pl.BlockSpec((B, N, De), lambda s: (0, 0, 0)),      # features (resident)
            pl.BlockSpec((B, N, A_), lambda s: (0, 0, 0)),      # u_hs (resident)
            pl.BlockSpec((1, B, 4 * Dd), lambda s: (s, 0, 0)),  # emb_gates[s]
            pl.BlockSpec((B, Dd), lambda s: (0, 0)),            # h0
            pl.BlockSpec((B, Dd), lambda s: (0, 0)),            # c0
            pl.BlockSpec((Dd, A_), lambda s: (0, 0)),           # attention W
            pl.BlockSpec((1, A_), lambda s: (0, 0)),            # attention W bias
            pl.BlockSpec((1, A_), lambda s: (0, 0)),            # attention A (row)
            pl.BlockSpec((1, 1), lambda s: (0, 0)),             # attention A bias
            pl.BlockSpec((De + Dd, 4 * Dd), lambda s: (0, 0)),  # packed gate weights
        ],
        out_specs=[
            pl.BlockSpec((S, B, Dd), lambda s: (0, 0, 0)),      # h_seq (resident slab)
            pl.BlockSpec((S, B, N), lambda s: (0, 0, 0)),       # alphas (resident slab)
        ],
        scratch_shapes=[pltpu.VMEM((B, Dd), jnp.float32),       # h
                        pltpu.VMEM((B, Dd), jnp.float32)],      # c
    )

    h_seq, alphas_t = pl.pallas_call(
        decoder_step_kernel,
        out_shape=(jax.ShapeDtypeStruct((S, B, Dd), jnp.float32),
                   jax.ShapeDtypeStruct((S, B, N), jnp.float32)),
        grid_spec=grid_spec,
        compiler_params=pltpu.CompilerParams(
            dimension_semantics=("arbitrary",),
            vmem_limit_bytes=32 * 1024 * 1024),
    )(features, u_hs, emb_gates, h0, c0,
      params["ww"], params["wb"], params["aw"], params["ab"], w_ch)

    # Vocab projection batched over all S steps: (S*B, Dd) @ (Dd, V) on the MXU.
    preds_flat = fcn_project(h_seq.reshape(S * B, Dd),
                             params["fcn_w"], params["fcn_b"])
    preds = jnp.transpose(preds_flat.reshape(S, B, V), (1, 0, 2))   # (B, S, V)
    alphas = jnp.transpose(alphas_t, (1, 0, 2))                     # (B, S, N)
    return preds, alphas


# --------------------------------------------------------------------------
# Deterministic parameter init (shapes from DecoderRNN.__init__); Linear weights
# stored pre-transposed to (in_dim, out_dim).
# --------------------------------------------------------------------------
def make_params(key, embed_size, vocab_size, attention_dim, encoder_dim, decoder_dim):
    E, V, A_, De, Dd = embed_size, vocab_size, attention_dim, encoder_dim, decoder_dim
    ks = jax.random.split(key, 10)

    def lin(k, fan_in, in_dim, out_dim):
        k1, k2 = jax.random.split(k)
        bound = 1.0 / np.sqrt(fan_in)
        w = jax.random.uniform(k1, (in_dim, out_dim), jnp.float32, -bound, bound)
        b = jax.random.uniform(k2, (1, out_dim), jnp.float32, -bound, bound)
        return w, b

    uw, ub = lin(ks[0], De, De, A_)            # attention.U
    ww, wb = lin(ks[1], Dd, Dd, A_)            # attention.W
    aw_t, ab = lin(ks[2], A_, A_, 1)           # attention.A
    aw = aw_t.T                                # (1, A_)
    ihw, ihb = lin(ks[3], De, De, Dd)          # init_h
    icw, icb = lin(ks[4], De, De, Dd)          # init_c
    wih, bih = lin(ks[5], Dd, E + De, 4 * Dd)  # lstm_cell W_ih (transposed)
    whh, bhh = lin(ks[6], Dd, Dd, 4 * Dd)      # lstm_cell W_hh (transposed)
    fcn_w, fcn_b = lin(ks[7], Dd, Dd, V)       # fcn
    embedding = jax.random.normal(ks[8], (V, E), jnp.float32)
    # f_beta exists in __init__ but is unused in forward() -> omitted.
    return dict(uw=uw, ub=ub, ww=ww, wb=wb, aw=aw, ab=ab,
                ihw=ihw, ihb=ihb, icw=icw, icb=icb,
                wih_e=wih[:E], wih_c=wih[E:], bih=bih, whh=whh, bhh=bhh,
                fcn_w=fcn_w, fcn_b=fcn_b, embedding=embedding)


# --------------------------------------------------------------------------
# Pure-JAX reference mirroring the PyTorch forward (for validation).
# --------------------------------------------------------------------------
def reference_forward(features, captions, params):
    embeds = params["embedding"][captions]
    mean_f = features.mean(axis=1)
    h = mean_f @ params["ihw"] + params["ihb"]
    c = mean_f @ params["icw"] + params["icb"]
    S = captions.shape[1] - 1
    Dd = h.shape[-1]
    preds, alphas = [], []
    for s in range(S):
        u_hs = features @ params["uw"] + params["ub"]
        w_ah = h @ params["ww"] + params["wb"]
        combined = jnp.tanh(u_hs + w_ah[:, None, :])
        scores = jnp.sum(combined * params["aw"][None, :, :], axis=-1) + params["ab"]
        alpha = jax.nn.softmax(scores, axis=1)
        context = jnp.sum(features * alpha[:, :, None], axis=1)
        gates = (embeds[:, s] @ params["wih_e"] + context @ params["wih_c"]
                 + params["bih"] + h @ params["whh"] + params["bhh"])
        i_g = jax.nn.sigmoid(gates[:, :Dd])
        f_g = jax.nn.sigmoid(gates[:, Dd:2 * Dd])
        g_g = jnp.tanh(gates[:, 2 * Dd:3 * Dd])
        o_g = jax.nn.sigmoid(gates[:, 3 * Dd:])
        c = f_g * c + i_g * g_g
        h = o_g * jnp.tanh(c)
        preds.append(h @ params["fcn_w"] + params["fcn_b"])
        alphas.append(alpha)
    return jnp.stack(preds, axis=1), jnp.stack(alphas, axis=1)


if __name__ == "__main__":
    # Small shapes: batch=2, num_features (spatial) N=8, encoder_dim=32,
    # decoder_dim=32, attention_dim=32, embed_size=32, vocab_size=64, seq T=8.
    B, N, De, Dd, A_, E, V, T = 2, 8, 32, 32, 32, 32, 64, 8

    key = jax.random.PRNGKey(0)
    k_par, k_feat, k_cap = jax.random.split(key, 3)
    params = make_params(k_par, E, V, A_, De, Dd)
    features = jax.random.normal(k_feat, (B, N, De), jnp.float32)
    captions = jax.random.randint(k_cap, (B, T), 0, V, jnp.int32)

    preds, alphas = decoder_forward(features, captions, params)
    preds = jax.block_until_ready(preds)
    alphas = jax.block_until_ready(alphas)

    preds_ref, alphas_ref = reference_forward(features, captions, params)
    assert preds.shape == (B, T - 1, V) and alphas.shape == (B, T - 1, N)
    np.testing.assert_allclose(np.asarray(preds), np.asarray(preds_ref),
                               rtol=1e-3, atol=1e-3)
    np.testing.assert_allclose(np.asarray(alphas), np.asarray(alphas_ref),
                               rtol=1e-3, atol=1e-3)
    print("KERNEL_OK")
</pallas_src>

<mosaic_0001>
module attributes {stable_mosaic.version = 11 : i64} {
  func.func @decoder_step_kernel(%arg0: i32, %arg1: memref<2x8x32xf32, #tpu.memory_space<vmem>>, %arg2: memref<2x8x32xf32, #tpu.memory_space<vmem>>, %arg3: memref<1x2x128xf32, #tpu.memory_space<vmem>>, %arg4: memref<2x32xf32, #tpu.memory_space<vmem>>, %arg5: memref<2x32xf32, #tpu.memory_space<vmem>>, %arg6: memref<32x32xf32, #tpu.memory_space<vmem>>, %arg7: memref<1x32xf32, #tpu.memory_space<vmem>>, %arg8: memref<1x32xf32, #tpu.memory_space<vmem>>, %arg9: memref<1x1xf32, #tpu.memory_space<vmem>>, %arg10: memref<64x128xf32, #tpu.memory_space<vmem>>, %arg11: memref<7x2x32xf32, #tpu.memory_space<vmem>>, %arg12: memref<7x2x8xf32, #tpu.memory_space<vmem>>, %arg13: memref<2x32xf32, #tpu.memory_space<vmem>>, %arg14: memref<2x32xf32, #tpu.memory_space<vmem>>) attributes {dimension_semantics = [#tpu.dimension_semantics<arbitrary>], iteration_bounds = array<i64: 7>, scalar_prefetch = 0 : i64, scratch_operands = 2 : i64, tpu.core_type = #tpu.core_type<tc>, window_params = [{pipeline_mode = #tpu.pipeline_mode<synchronous>, transform_indices = @transform_0, window_bounds = array<i64: 2, 8, 32>}, {pipeline_mode = #tpu.pipeline_mode<synchronous>, transform_indices = @transform_1, window_bounds = array<i64: 2, 8, 32>}, {transform_indices = @transform_2, window_bounds = array<i64: 1, 2, 128>}, {pipeline_mode = #tpu.pipeline_mode<synchronous>, transform_indices = @transform_3, window_bounds = array<i64: 2, 32>}, {pipeline_mode = #tpu.pipeline_mode<synchronous>, transform_indices = @transform_4, window_bounds = array<i64: 2, 32>}, {pipeline_mode = #tpu.pipeline_mode<synchronous>, transform_indices = @transform_5, window_bounds = array<i64: 32, 32>}, {pipeline_mode = #tpu.pipeline_mode<synchronous>, transform_indices = @transform_6, window_bounds = array<i64: 1, 32>}, {pipeline_mode = #tpu.pipeline_mode<synchronous>, transform_indices = @transform_7, window_bounds = array<i64: 1, 32>}, {pipeline_mode = #tpu.pipeline_mode<synchronous>, transform_indices = @transform_8, window_bounds = array<i64: 1, 1>}, {pipeline_mode = #tpu.pipeline_mode<synchronous>, transform_indices = @transform_9, window_bounds = array<i64: 64, 128>}, {pipeline_mode = #tpu.pipeline_mode<synchronous>, transform_indices = @transform_10, window_bounds = array<i64: 7, 2, 32>}, {pipeline_mode = #tpu.pipeline_mode<synchronous>, transform_indices = @transform_11, window_bounds = array<i64: 7, 2, 8>}]} {
    %c0_i32 = arith.constant 0 : i32
    %0 = arith.cmpi eq, %arg0, %c0_i32 : i32
    %1 = arith.extui %0 : i1 to i32
    %c0_i32_0 = arith.constant 0 : i32
    %2 = arith.cmpi ne, %1, %c0_i32_0 : i32
    scf.if %2 {
      %c0_39 = arith.constant 0 : index
      %c0_40 = arith.constant 0 : index
      %77 = vector.load %arg4[%c0_39, %c0_40] : memref<2x32xf32, #tpu.memory_space<vmem>>, vector<2x32xf32>
      %c0_41 = arith.constant 0 : index
      %c0_42 = arith.constant 0 : index
      %78 = vector.load %arg13[%c0_41, %c0_42] : memref<2x32xf32, #tpu.memory_space<vmem>>, vector<2x32xf32>
      tpu.vector_store %arg13[%c0_41, %c0_42], %77 {strides = array<i32>} : memref<2x32xf32, #tpu.memory_space<vmem>>, vector<2x32xf32>,
      %c0_43 = arith.constant 0 : index
      %c0_44 = arith.constant 0 : index
      %79 = vector.load %arg5[%c0_43, %c0_44] : memref<2x32xf32, #tpu.memory_space<vmem>>, vector<2x32xf32>
      %c0_45 = arith.constant 0 : index
      %c0_46 = arith.constant 0 : index
      %80 = vector.load %arg14[%c0_45, %c0_46] : memref<2x32xf32, #tpu.memory_space<vmem>>, vector<2x32xf32>
      tpu.vector_store %arg14[%c0_45, %c0_46], %79 {strides = array<i32>} : memref<2x32xf32, #tpu.memory_space<vmem>>, vector<2x32xf32>,
    } else {
    }
    %c0 = arith.constant 0 : index
    %c0_1 = arith.constant 0 : index
    %c0_2 = arith.constant 0 : index
    %3 = vector.load %arg1[%c0, %c0_1, %c0_2] : memref<2x8x32xf32, #tpu.memory_space<vmem>>, vector<2x8x32xf32>
    %c0_3 = arith.constant 0 : index
    %c0_4 = arith.constant 0 : index
    %4 = vector.load %arg13[%c0_3, %c0_4] : memref<2x32xf32, #tpu.memory_space<vmem>>, vector<2x32xf32>
    %c0_5 = arith.constant 0 : index
    %c0_6 = arith.constant 0 : index
    %5 = vector.load %arg14[%c0_5, %c0_6] : memref<2x32xf32, #tpu.memory_space<vmem>>, vector<2x32xf32>
    %c0_7 = arith.constant 0 : index
    %c0_8 = arith.constant 0 : index
    %6 = vector.load %arg6[%c0_7, %c0_8] : memref<32x32xf32, #tpu.memory_space<vmem>>, vector<32x32xf32>
    %cst = arith.constant dense<0.000000e+00> : vector<2x32xf32>
    %7 = tpu.matmul %4, %6, %cst {dimension_numbers = #tpu.dot_dimension_numbers<[1], [0], [0], [1], [0, 0, 1, 1], [], []>} : vector<2x32xf32>, vector<32x32xf32>, vector<2x32xf32> -> vector<2x32xf32>
    %c0_9 = arith.constant 0 : index
    %c0_10 = arith.constant 0 : index
    %8 = vector.load %arg7[%c0_9, %c0_10] : memref<1x32xf32, #tpu.memory_space<vmem>>, vector<1x32xf32>
    %9 = vector.broadcast %8 : vector<1x32xf32> to vector<2x32xf32>
    %10 = arith.addf %7, %9 : vector<2x32xf32>
    %c0_11 = arith.constant 0 : index
    %c0_12 = arith.constant 0 : index
    %c0_13 = arith.constant 0 : index
    %11 = vector.load %arg2[%c0_11, %c0_12, %c0_13] : memref<2x8x32xf32, #tpu.memory_space<vmem>>, vector<2x8x32xf32>
    %12 = vector.shape_cast %10 : vector<2x32xf32> to vector<2x1x32xf32>
    %13 = vector.broadcast %12 : vector<2x1x32xf32> to vector<2x8x32xf32>
    %14 = arith.addf %11, %13 : vector<2x8x32xf32>
    %15 = math.tanh %14 : vector<2x8x32xf32>
    %c0_14 = arith.constant 0 : index
    %c0_15 = arith.constant 0 : index
    %16 = vector.load %arg8[%c0_14, %c0_15] : memref<1x32xf32, #tpu.memory_space<vmem>>, vector<1x32xf32>
    %17 = vector.shape_cast %16 : vector<1x32xf32> to vector<1x1x32xf32>
    %18 = vector.broadcast %17 : vector<1x1x32xf32> to vector<2x8x32xf32>
    %19 = arith.mulf %15, %18 : vector<2x8x32xf32>
    %cst_16 = arith.constant dense<0.000000e+00> : vector<2x8xf32>
    %20 = vector.multi_reduction <add>, %19, %cst_16 [2] : vector<2x8x32xf32> to vector<2x8xf32>
    %c0_17 = arith.constant 0 : index
    %c0_18 = arith.constant 0 : index
    %21 = vector.load %arg9[%c0_17, %c0_18] : memref<1x1xf32, #tpu.memory_space<vmem>>, vector<1x1xf32>
    %22 = vector.broadcast %21 : vector<1x1xf32> to vector<2x8xf32>
    %23 = arith.addf %20, %22 : vector<2x8xf32>
    %cst_19 = arith.constant dense<0xFF800000> : vector<2xf32>
    %24 = vector.multi_reduction <maximumf>, %23, %cst_19 [1] : vector<2x8xf32> to vector<2xf32>
    %25 = vector.shape_cast %24 : vector<2xf32> to vector<2x1xf32>
    %26 = vector.broadcast %25 : vector<2x1xf32> to vector<2x8xf32>
    %27 = arith.subf %23, %26 : vector<2x8xf32>
    %28 = math.exp %27 : vector<2x8xf32>
    %cst_20 = arith.constant dense<0.000000e+00> : vector<2xf32>
    %29 = vector.multi_reduction <add>, %28, %cst_20 [1] : vector<2x8xf32> to vector<2xf32>
    %30 = vector.shape_cast %29 : vector<2xf32> to vector<2x1xf32>
    %31 = vector.broadcast %30 : vector<2x1xf32> to vector<2x8xf32>
    %32 = arith.divf %28, %31 : vector<2x8xf32>
    %33 = vector.shape_cast %32 : vector<2x8xf32> to vector<2x1x8xf32>
    "tpu.trace_start"() <{level = 10 : i32, message = "bqn,bnd->bqd"}> : () -> ()
    %cst_21 = arith.constant dense<0.000000e+00> : vector<2x1x32xf32>
    %34 = tpu.matmul %33, %3, %cst_21 {dimension_numbers = #tpu.dot_dimension_numbers<[2], [1], [1], [2], [0, 0, 0, 1, 1, 2], [0], [0]>} : vector<2x1x8xf32>, vector<2x8x32xf32>, vector<2x1x32xf32> -> vector<2x1x32xf32>
    "tpu.trace_stop"() : () -> ()
    %35 = vector.shape_cast %34 : vector<2x1x32xf32> to vector<2x32xf32>
    %36 = tpu.concatenate %35, %4 in 1 : vector<2x32xf32>, vector<2x32xf32> -> vector<2x64xf32>
    %c0_22 = arith.constant 0 : index
    %c0_23 = arith.constant 0 : index
    %c0_24 = arith.constant 0 : index
    %37 = vector.load %arg3[%c0_22, %c0_23, %c0_24] : memref<1x2x128xf32, #tpu.memory_space<vmem>>, vector<1x2x128xf32>
    %38 = vector.shape_cast %37 : vector<1x2x128xf32> to vector<2x128xf32>
    %c0_25 = arith.constant 0 : index
    %c0_26 = arith.constant 0 : index
    %39 = vector.load %arg10[%c0_25, %c0_26] : memref<64x128xf32, #tpu.memory_space<vmem>>, vector<64x128xf32>
    %cst_27 = arith.constant dense<0.000000e+00> : vector<2x128xf32>
    %40 = tpu.matmul %36, %39, %cst_27 {dimension_numbers = #tpu.dot_dimension_numbers<[1], [0], [0], [1], [0, 0, 1, 1], [], []>} : vector<2x64xf32>, vector<64x128xf32>, vector<2x128xf32> -> vector<2x128xf32>
    %41 = arith.addf %38, %40 : vector<2x128xf32>
    %42 = vector.extract_strided_slice %41 {offsets = [0, 0], sizes = [2, 32], strides = [1, 1]} : vector<2x128xf32> to vector<2x32xf32>
    %43 = arith.negf %42 : vector<2x32xf32>
    %44 = math.exp %43 : vector<2x32xf32>
    %cst_28 = arith.constant 1.000000e+00 : f32
    %45 = vector.broadcast %cst_28 : f32 to vector<2x32xf32>
    %46 = arith.addf %45, %44 : vector<2x32xf32>
    %47 = arith.divf %45, %46 : vector<2x32xf32>
    %48 = vector.extract_strided_slice %41 {offsets = [0, 32], sizes = [2, 32], strides = [1, 1]} : vector<2x128xf32> to vector<2x32xf32>
    %49 = arith.negf %48 : vector<2x32xf32>
    %50 = math.exp %49 : vector<2x32xf32>
    %cst_29 = arith.constant 1.000000e+00 : f32
    %51 = vector.broadcast %cst_29 : f32 to vector<2x32xf32>
    %52 = arith.addf %51, %50 : vector<2x32xf32>
    %53 = arith.divf %51, %52 : vector<2x32xf32>
    %54 = vector.extract_strided_slice %41 {offsets = [0, 64], sizes = [2, 32], strides = [1, 1]} : vector<2x128xf32> to vector<2x32xf32>
    %55 = math.tanh %54 : vector<2x32xf32>
    %56 = vector.extract_strided_slice %41 {offsets = [0, 96], sizes = [2, 32], strides = [1, 1]} : vector<2x128xf32> to vector<2x32xf32>
    %57 = arith.negf %56 : vector<2x32xf32>
    %58 = math.exp %57 : vector<2x32xf32>
    %cst_30 = arith.constant 1.000000e+00 : f32
    %59 = vector.broadcast %cst_30 : f32 to vector<2x32xf32>
    %60 = arith.addf %59, %58 : vector<2x32xf32>
    %61 = arith.divf %59, %60 : vector<2x32xf32>
    %62 = arith.mulf %53, %5 : vector<2x32xf32>
    %63 = arith.mulf %47, %55 : vector<2x32xf32>
    %64 = arith.addf %62, %63 : vector<2x32xf32>
    %65 = math.tanh %64 : vector<2x32xf32>
    %66 = arith.mulf %61, %65 : vector<2x32xf32>
    %c0_31 = arith.constant 0 : index
    %c0_32 = arith.constant 0 : index
    %67 = vector.load %arg13[%c0_31, %c0_32] : memref<2x32xf32, #tpu.memory_space<vmem>>, vector<2x32xf32>
    tpu.vector_store %arg13[%c0_31, %c0_32], %66 {strides = array<i32>} : memref<2x32xf32, #tpu.memory_space<vmem>>, vector<2x32xf32>,
    %c0_33 = arith.constant 0 : index
    %c0_34 = arith.constant 0 : index
    %68 = vector.load %arg14[%c0_33, %c0_34] : memref<2x32xf32, #tpu.memory_space<vmem>>, vector<2x32xf32>
    tpu.vector_store %arg14[%c0_33, %c0_34], %64 {strides = array<i32>} : memref<2x32xf32, #tpu.memory_space<vmem>>, vector<2x32xf32>,
    %69 = arith.index_cast %arg0 : i32 to index
    %c0_35 = arith.constant 0 : index
    %c0_36 = arith.constant 0 : index
    %70 = vector.load %arg11[%69, %c0_35, %c0_36] : memref<7x2x32xf32, #tpu.memory_space<vmem>>, vector<1x2x32xf32>
    %71 = vector.shape_cast %70 : vector<1x2x32xf32> to vector<2x32xf32>
    %72 = vector.shape_cast %66 : vector<2x32xf32> to vector<1x2x32xf32>
    tpu.vector_store %arg11[%69, %c0_35, %c0_36], %72 {strides = array<i32>} : memref<7x2x32xf32, #tpu.memory_space<vmem>>, vector<1x2x32xf32>,
    %73 = arith.index_cast %arg0 : i32 to index
    %c0_37 = arith.constant 0 : index
    %c0_38 = arith.constant 0 : index
    %74 = vector.load %arg12[%73, %c0_37, %c0_38] : memref<7x2x8xf32, #tpu.memory_space<vmem>>, vector<1x2x8xf32>
    %75 = vector.shape_cast %74 : vector<1x2x8xf32> to vector<2x8xf32>
    %76 = vector.shape_cast %32 : vector<2x8xf32> to vector<1x2x8xf32>
    tpu.vector_store %arg12[%73, %c0_37, %c0_38], %76 {strides = array<i32>} : memref<7x2x8xf32, #tpu.memory_space<vmem>>, vector<1x2x8xf32>,
    return
  }
  func.func @transform_0(%arg0: i32) -> (i32, i32, i32) {
    %c0_i32 = arith.constant 0 : i32
    %c0_i32_0 = arith.constant 0 : i32
    %c0_i32_1 = arith.constant 0 : i32
    %c0_i32_2 = arith.constant 0 : i32
    return %c0_i32, %c0_i32_0, %c0_i32_1 : i32, i32, i32
  }
  func.func @transform_1(%arg0: i32) -> (i32, i32, i32) {
    %c0_i32 = arith.constant 0 : i32
    %c0_i32_0 = arith.constant 0 : i32
    %c0_i32_1 = arith.constant 0 : i32
    %c0_i32_2 = arith.constant 0 : i32
    return %c0_i32, %c0_i32_0, %c0_i32_1 : i32, i32, i32
  }
  func.func @transform_2(%arg0: i32) -> (i32, i32, i32) {
    %c0_i32 = arith.constant 0 : i32
    %c0_i32_0 = arith.constant 0 : i32
    %c0_i32_1 = arith.constant 0 : i32
    return %arg0, %c0_i32, %c0_i32_0 : i32, i32, i32
  }
  func.func @transform_3(%arg0: i32) -> (i32, i32) {
    %c0_i32 = arith.constant 0 : i32
    %c0_i32_0 = arith.constant 0 : i32
    %c0_i32_1 = arith.constant 0 : i32
    return %c0_i32, %c0_i32_0 : i32, i32
  }
  func.func @transform_4(%arg0: i32) -> (i32, i32) {
    %c0_i32 = arith.constant 0 : i32
    %c0_i32_0 = arith.constant 0 : i32
    %c0_i32_1 = arith.constant 0 : i32
    return %c0_i32, %c0_i32_0 : i32, i32
  }
  func.func @transform_5(%arg0: i32) -> (i32, i32) {
    %c0_i32 = arith.constant 0 : i32
    %c0_i32_0 = arith.constant 0 : i32
    %c0_i32_1 = arith.constant 0 : i32
    return %c0_i32, %c0_i32_0 : i32, i32
  }
  func.func @transform_6(%arg0: i32) -> (i32, i32) {
    %c0_i32 = arith.constant 0 : i32
    %c0_i32_0 = arith.constant 0 : i32
    %c0_i32_1 = arith.constant 0 : i32
    return %c0_i32, %c0_i32_0 : i32, i32
  }
  func.func @transform_7(%arg0: i32) -> (i32, i32) {
    %c0_i32 = arith.constant 0 : i32
    %c0_i32_0 = arith.constant 0 : i32
    %c0_i32_1 = arith.constant 0 : i32
    return %c0_i32, %c0_i32_0 : i32, i32
  }
  func.func @transform_8(%arg0: i32) -> (i32, i32) {
    %c0_i32 = arith.constant 0 : i32
    %c0_i32_0 = arith.constant 0 : i32
    %c0_i32_1 = arith.constant 0 : i32
    return %c0_i32, %c0_i32_0 : i32, i32
  }
  func.func @transform_9(%arg0: i32) -> (i32, i32) {
    %c0_i32 = arith.constant 0 : i32
    %c0_i32_0 = arith.constant 0 : i32
    %c0_i32_1 = arith.constant 0 : i32
    return %c0_i32, %c0_i32_0 : i32, i32
  }
  func.func @transform_10(%arg0: i32) -> (i32, i32, i32) {
    %c0_i32 = arith.constant 0 : i32
    %c0_i32_0 = arith.constant 0 : i32
    %c0_i32_1 = arith.constant 0 : i32
    %c0_i32_2 = arith.constant 0 : i32
    return %c0_i32, %c0_i32_0, %c0_i32_1 : i32, i32, i32
  }
  func.func @transform_11(%arg0: i32) -> (i32, i32, i32) {
    %c0_i32 = arith.constant 0 : i32
    %c0_i32_0 = arith.constant 0 : i32
    %c0_i32_1 = arith.constant 0 : i32
    %c0_i32_2 = arith.constant 0 : i32
    return %c0_i32, %c0_i32_0, %c0_i32_1 : i32, i32, i32
  }
}

</mosaic_0001>

<llo_original>
// kernel: tpu_custom_call.1
$region0: #{tpu_custom_call.1}
  #allocation0 [shape = 'u32[]', space=smem, size = 0x4, offset = 0x4, fixed_abs, tag = 'smem constant byte address 0x4 - core index']
  #allocation1 [shape = 'u32[144,128]{1,0:T(1,128)}', space=vmem, size = 0x12000, scoped, tag = 'internal scratch']
  #allocation2 [shape = 'f32[2,32]{1,0:T(2,128)}', space=vmem, size = 0x400, scoped, tag = 'scratch operand']
  #allocation3 [shape = 'f32[2,32]{1,0:T(2,128)}', space=vmem, size = 0x400, scoped, tag = 'scratch operand']
  #allocation4 [shape = 'f32[1,1]{1,0:T(1,128)S(1)}', space=vmem, size = 0x200, scoped, tag = 'scoped memory for tpu_custom_call.1']
  %s0 = inlined_call_operand.hbm [shape: f32[2,8,32], index: 0, kind: input, shape index: {}]
  %s1 = inlined_call_operand.hbm [shape: f32[2,8,32], index: 1, kind: input, shape index: {}]
  %s2 = inlined_call_operand.hbm [shape: f32[7,2,128], index: 2, kind: input, shape index: {}]
  %s3 = inlined_call_operand.vmem [shape: f32[2,32], index: 3, kind: input, shape index: {}]
  %s4 = inlined_call_operand.vmem [shape: f32[2,32], index: 4, kind: input, shape index: {}]
  %s5 = inlined_call_operand.hbm [shape: f32[32,32], index: 5, kind: input, shape index: {}]
  %s6 = inlined_call_operand.vmem [shape: f32[1,32], index: 6, kind: input, shape index: {}]
  %s7 = inlined_call_operand.vmem [shape: f32[1,32], index: 7, kind: input, shape index: {}]
  %s8 = inlined_call_operand.<no memory space> [shape: f32[1,1], index: 8, kind: input, shape index: {}]
  %s9 = inlined_call_operand.hbm [shape: f32[64,128], index: 9, kind: input, shape index: {}]
  %s10 = inlined_call_operand.hbm [shape: f32[7,2,32], index: 10, kind: output, shape index: {0}]
  %s11 = inlined_call_operand.hbm [shape: f32[7,2,8], index: 11, kind: output, shape index: {1}]
  %12 = xla_tuple %s10, %s11
  %s13 = sld [smem:[#allocation0]]
  $region105: #{tpu_custom_call.1} parent=0
    _
  %s15 = ssub.s32 1, %s13
  %s16 = scalar_select 0, %s15, %s13
  %v17 = vstv %s8
  %18 = vst [vmem:[#allocation4] sm:$0x1] %v17
  $region1: #{tpu_custom_call.1} parent=0
    #allocation5 [shape = 'u8[8192]{0}', space=vmem, size = 0x2000, scoped, tag = 'input window, operand 0, single buffered']
    #allocation6 [shape = 's32[2]{0}', space=sflag, size = 0x8, scoped, tag = 'scoped memory for tpu_custom_call.1']
    #allocation7 [shape = 's32[2]{0}', space=sflag, size = 0x8, scoped, tag = 'scoped memory for tpu_custom_call.1']
    #allocation8 [shape = 'u8[8192]{0}', space=vmem, size = 0x2000, scoped, tag = 'input window, operand 1, single buffered']
    #allocation9 [shape = 's32[1]{0}', space=sflag, size = 0x4, scoped, tag = 'scoped memory for tpu_custom_call.1']
    #allocation10 [shape = 'u8[2048]{0}', space=vmem, size = 0x800, scoped, tag = 'input window, operand 2']
    #allocation11 [shape = 'u8[16384]{0}', space=vmem, size = 0x4000, scoped, tag = 'input window, operand 5, single buffered']
    #allocation12 [shape = 'u8[32768]{0}', space=vmem, size = 0x8000, scoped, tag = 'input window, operand 9, single buffered']
    #allocation13 [shape = 's32[1]{0}', space=sflag, size = 0x4, scoped, tag = 'scoped memory for tpu_custom_call.1']
    #allocation14 [shape = 'u8[7168]{0}', space=vmem, size = 0x1c00, scoped, tag = 'output window, operand 0, single buffered']
    #allocation15 [shape = 'u8[7168]{0}', space=vmem, size = 0x1c00, scoped, tag = 'output window, operand 1, single buffered']
    #allocation16 [shape = 's32[1]{0}', space=sflag, size = 0x4, scoped, tag = 'scoped memory for tpu_custom_call.1']
    %19 = vsyncpa [#allocation6], 0
    %20 = vsyncpa [#allocation9], 0
    %21 = vsyncpa [#allocation13], 0
    %22 = vsyncpa [#allocation7], 0
    %23 = vsyncpa [#allocation16], 0
    loop: start=0, step=1, limit=9
    $region2: #{tpu_custom_call.1} parent=1 // loop_pre_header
      _
    $region3: #{tpu_custom_call.1} parent=1 // loop_header
      %s25 = sphi 0, %s29
      %p26 = scmp.ge.s32.totalorder %s25, 9
      %s33 = sphi 0, %s33
      %s35 = sphi 0, %s33
      %s36 = sphi 0, %s35
      %s50 = sphi 0, %s36
      %s54 = sphi 0, %s54
      %s56 = sphi 0, %s54
      %s57 = sphi 0, %s56
      %s71 = sphi 0, %s57
      %s77 = sphi 0, %s79
      %s80 = sphi 0, %s77
      %s81 = sphi 0, %s80
      %s97 = sphi 0, %s81
      %s101 = sphi 0, %s101
      %s103 = sphi 0, %s101
      %s104 = sphi 0, %s103
      %s118 = sphi 0, %s104
      %s122 = sphi 0, %s122
      %s124 = sphi 0, %s122
      %s125 = sphi 0, %s124
      %s139 = sphi 0, %s125
      %s143 = sphi 0, %s143
      %s145 = sphi 0, %s143
      %s146 = sphi 0, %s145
      %s160 = sphi 0, %s146
      %s164 = sphi 0, %s164
      %s166 = sphi 0, %s164
      %s167 = sphi 0, %s166
      %s181 = sphi 0, %s167
      %s185 = sphi 0, %s185
      %s187 = sphi 0, %s185
      %s188 = sphi 0, %s187
      %s202 = sphi 0, %s188
      %s206 = sphi 0, %s206
      %s208 = sphi 0, %s206
      %s209 = sphi 0, %s208
      %s223 = sphi 0, %s209
      %s227 = sphi 0, %s227
      %s229 = sphi 0, %s227
      %s230 = sphi 0, %s229
      %s244 = sphi 0, %s230
      %s248 = sphi 0, %s248
      %s250 = sphi 0, %s248
      %s251 = sphi 0, %s250
      %s265 = sphi 0, %s251
      %s269 = sphi 0, %s269
      %s271 = sphi 0, %s269
      %s272 = sphi 0, %s271
      %s286 = sphi 0, %s272
    $region4: #{tpu_custom_call.1} parent=1 // loop_header_branch
      %28 = sbr.rel (%p26) target = $region8
    $region5: #{tpu_custom_call.1} parent=1 // loop_body
      %s30 = ssub.s32 %s25, 1
      %s31 = ssub.s32 %s25, 2
      %s32 = sadd.s32 %s25, 1
      %s34 = sadd.s32 %s33, 1
      %p37 = scmp.eq.s32.totalorder %s25, 6
      %p38 = scmp.ne.s32.totalorder %s33, %s35
      %p39 = scmp.eq.s32.totalorder %s25, 0
      %p40 = por %p38, %p39
      %p41 = scmp.ne.s32.totalorder %s33, %s35
      %p42 = scmp.eq.s32.totalorder %s30, 6
      %p43 = por %p41, %p42
      %p44 = scmp.ne.s32.totalorder %s35, %s36
      %p45 = scmp.eq.s32.totalorder %s30, 0
      %p46 = por %p44, %p45
      %p47 = scmp.ne.s32.totalorder %s35, %s36
      %p48 = scmp.eq.s32.totalorder %s31, 6
      %p49 = por %p47, %p48
      %p51 = scmp.ne.s32.totalorder %s36, %s50
      %p52 = scmp.eq.s32.totalorder %s31, 0
      %p53 = por %p51, %p52
      %s55 = sadd.s32 %s54, 1
      %p58 = scmp.eq.s32.totalorder %s25, 6
      %p59 = scmp.ne.s32.totalorder %s54, %s56
      %p60 = scmp.eq.s32.totalorder %s25, 0
      %p61 = por %p59, %p60
      %p62 = scmp.ne.s32.totalorder %s54, %s56
      %p63 = scmp.eq.s32.totalorder %s30, 6
      %p64 = por %p62, %p63
      %p65 = scmp.ne.s32.totalorder %s56, %s57
      %p66 = scmp.eq.s32.totalorder %s30, 0
      %p67 = por %p65, %p66
      %p68 = scmp.ne.s32.totalorder %s56, %s57
      %p69 = scmp.eq.s32.totalorder %s31, 6
      %p70 = por %p68, %p69
      %p72 = scmp.ne.s32.totalorder %s57, %s71
      %p73 = scmp.eq.s32.totalorder %s31, 0
      %p74 = por %p72, %p73
      %s75 = ssub.s32 %s25, %s32
      %p76 = scmp.eq.s32.totalorder %s75, 0
      %s78 = sadd.s32 %s77, 1
      %s79 = scalar_select %p76, %s77, %s78
      %p82 = pneg %p76
      %p83 = scmp.eq.s32.totalorder %s25, 6
      %p84 = por %p82, %p83
      %p85 = scmp.ne.s32.totalorder %s77, %s80
      %p86 = scmp.eq.s32.totalorder %s25, 0
      %p87 = por %p85, %p86
      %p88 = scmp.ne.s32.totalorder %s77, %s80
      %p89 = scmp.eq.s32.totalorder %s30, 6
      %p90 = por %p88, %p89
      %p91 = scmp.ne.s32.totalorder %s80, %s81
      %p92 = scmp.eq.s32.totalorder %s30, 0
      %p93 = por %p91, %p92
      %p94 = scmp.ne.s32.totalorder %s80, %s81
      %p95 = scmp.eq.s32.totalorder %s31, 6
      %p96 = por %p94, %p95
      %p98 = scmp.ne.s32.totalorder %s81, %s97
      %p99 = scmp.eq.s32.totalorder %s31, 0
      %p100 = por %p98, %p99
      %s102 = sadd.s32 %s101, 1
      %p105 = scmp.eq.s32.totalorder %s25, 6
      %p106 = scmp.ne.s32.totalorder %s101, %s103
      %p107 = scmp.eq.s32.totalorder %s25, 0
      %p108 = por %p106, %p107
      %p109 = scmp.ne.s32.totalorder %s101, %s103
      %p110 = scmp.eq.s32.totalorder %s30, 6
      %p111 = por %p109, %p110
      %p112 = scmp.ne.s32.totalorder %s103, %s104
      %p113 = scmp.eq.s32.totalorder %s30, 0
      %p114 = por %p112, %p113
      %p115 = scmp.ne.s32.totalorder %s103, %s104
      %p116 = scmp.eq.s32.totalorder %s31, 6
      %p117 = por %p115, %p116
      %p119 = scmp.ne.s32.totalorder %s104, %s118
      %p120 = scmp.eq.s32.totalorder %s31, 0
      %p121 = por %p119, %p120
      %s123 = sadd.s32 %s122, 1
      %p126 = scmp.eq.s32.totalorder %s25, 6
      %p127 = scmp.ne.s32.totalorder %s122, %s124
      %p128 = scmp.eq.s32.totalorder %s25, 0
      %p129 = por %p127, %p128
      %p130 = scmp.ne.s32.totalorder %s122, %s124
      %p131 = scmp.eq.s32.totalorder %s30, 6
      %p132 = por %p130, %p131
      %p133 = scmp.ne.s32.totalorder %s124, %s125
      %p134 = scmp.eq.s32.totalorder %s30, 0
      %p135 = por %p133, %p134
      %p136 = scmp.ne.s32.totalorder %s124, %s125
      %p137 = scmp.eq.s32.totalorder %s31, 6
      %p138 = por %p136, %p137
      %p140 = scmp.ne.s32.totalorder %s125, %s139
      %p141 = scmp.eq.s32.totalorder %s31, 0
      %p142 = por %p140, %p141
      %s144 = sadd.s32 %s143, 1
      %p147 = scmp.eq.s32.totalorder %s25, 6
      %p148 = scmp.ne.s32.totalorder %s143, %s145
      %p149 = scmp.eq.s32.totalorder %s25, 0
      %p150 = por %p148, %p149
      %p151 = scmp.ne.s32.totalorder %s143, %s145
      %p152 = scmp.eq.s32.totalorder %s30, 6
      %p153 = por %p151, %p152
      %p154 = scmp.ne.s32.totalorder %s145, %s146
      %p155 = scmp.eq.s32.totalorder %s30, 0
      %p156 = por %p154, %p155
      %p157 = scmp.ne.s32.totalorder %s145, %s146
      %p158 = scmp.eq.s32.totalorder %s31, 6
      %p159 = por %p157, %p158
      %p161 = scmp.ne.s32.totalorder %s146, %s160
      %p162 = scmp.eq.s32.totalorder %s31, 0
      %p163 = por %p161, %p162
      %s165 = sadd.s32 %s164, 1
      %p168 = scmp.eq.s32.totalorder %s25, 6
      %p169 = scmp.ne.s32.totalorder %s164, %s166
      %p170 = scmp.eq.s32.totalorder %s25, 0
      %p171 = por %p169, %p170
      %p172 = scmp.ne.s32.totalorder %s164, %s166
      %p173 = scmp.eq.s32.totalorder %s30, 6
      %p174 = por %p172, %p173
      %p175 = scmp.ne.s32.totalorder %s166, %s167
      %p176 = scmp.eq.s32.totalorder %s30, 0
      %p177 = por %p175, %p176
      %p178 = scmp.ne.s32.totalorder %s166, %s167
      %p179 = scmp.eq.s32.totalorder %s31, 6
      %p180 = por %p178, %p179
      %p182 = scmp.ne.s32.totalorder %s167, %s181
      %p183 = scmp.eq.s32.totalorder %s31, 0
      %p184 = por %p182, %p183
      %s186 = sadd.s32 %s185, 1
      %p189 = scmp.eq.s32.totalorder %s25, 6
      %p190 = scmp.ne.s32.totalorder %s185, %s187
      %p191 = scmp.eq.s32.totalorder %s25, 0
      %p192 = por %p190, %p191
      %p193 = scmp.ne.s32.totalorder %s185, %s187
      %p194 = scmp.eq.s32.totalorder %s30, 6
      %p195 = por %p193, %p194
      %p196 = scmp.ne.s32.totalorder %s187, %s188
      %p197 = scmp.eq.s32.totalorder %s30, 0
      %p198 = por %p196, %p197
      %p199 = scmp.ne.s32.totalorder %s187, %s188
      %p200 = scmp.eq.s32.totalorder %s31, 6
      %p201 = por %p199, %p200
      %p203 = scmp.ne.s32.totalorder %s188, %s202
      %p204 = scmp.eq.s32.totalorder %s31, 0
      %p205 = por %p203, %p204
      %s207 = sadd.s32 %s206, 1
      %p210 = scmp.eq.s32.totalorder %s25, 6
      %p211 = scmp.ne.s32.totalorder %s206, %s208
      %p212 = scmp.eq.s32.totalorder %s25, 0
      %p213 = por %p211, %p212
      %p214 = scmp.ne.s32.totalorder %s206, %s208
      %p215 = scmp.eq.s32.totalorder %s30, 6
      %p216 = por %p214, %p215
      %p217 = scmp.ne.s32.totalorder %s208, %s209
      %p218 = scmp.eq.s32.totalorder %s30, 0
      %p219 = por %p217, %p218
      %p220 = scmp.ne.s32.totalorder %s208, %s209
      %p221 = scmp.eq.s32.totalorder %s31, 6
      %p222 = por %p220, %p221
      %p224 = scmp.ne.s32.totalorder %s209, %s223
      %p225 = scmp.eq.s32.totalorder %s31, 0
      %p226 = por %p224, %p225
      %s228 = sadd.s32 %s227, 1
      %p231 = scmp.eq.s32.totalorder %s25, 6
      %p232 = scmp.ne.s32.totalorder %s227, %s229
      %p233 = scmp.eq.s32.totalorder %s25, 0
      %p234 = por %p232, %p233
      %p235 = scmp.ne.s32.totalorder %s227, %s229
      %p236 = scmp.eq.s32.totalorder %s30, 6
      %p237 = por %p235, %p236
      %p238 = scmp.ne.s32.totalorder %s229, %s230
      %p239 = scmp.eq.s32.totalorder %s30, 0
      %p240 = por %p238, %p239
      %p241 = scmp.ne.s32.totalorder %s229, %s230
      %p242 = scmp.eq.s32.totalorder %s31, 6
      %p243 = por %p241, %p242
      %p245 = scmp.ne.s32.totalorder %s230, %s244
      %p246 = scmp.eq.s32.totalorder %s31, 0
      %p247 = por %p245, %p246
      %s249 = sadd.s32 %s248, 1
      %p252 = scmp.eq.s32.totalorder %s25, 6
      %p253 = scmp.ne.s32.totalorder %s248, %s250
      %p254 = scmp.eq.s32.totalorder %s25, 0
      %p255 = por %p253, %p254
      %p256 = scmp.ne.s32.totalorder %s248, %s250
      %p257 = scmp.eq.s32.totalorder %s30, 6
      %p258 = por %p256, %p257
      %p259 = scmp.ne.s32.totalorder %s250, %s251
      %p260 = scmp.eq.s32.totalorder %s30, 0
      %p261 = por %p259, %p260
      %p262 = scmp.ne.s32.totalorder %s250, %s251
      %p263 = scmp.eq.s32.totalorder %s31, 6
      %p264 = por %p262, %p263
      %p266 = scmp.ne.s32.totalorder %s251, %s265
      %p267 = scmp.eq.s32.totalorder %s31, 0
      %p268 = por %p266, %p267
      %s270 = sadd.s32 %s269, 1
      %p273 = scmp.eq.s32.totalorder %s25, 6
      %p274 = scmp.ne.s32.totalorder %s269, %s271
      %p275 = scmp.eq.s32.totalorder %s25, 0
      %p276 = por %p274, %p275
      %p277 = scmp.ne.s32.totalorder %s269, %s271
      %p278 = scmp.eq.s32.totalorder %s30, 6
      %p279 = por %p277, %p278
      %p280 = scmp.ne.s32.totalorder %s271, %s272
      %p281 = scmp.eq.s32.totalorder %s30, 0
      %p282 = por %p280, %p281
      %p283 = scmp.ne.s32.totalorder %s271, %s272
      %p284 = scmp.eq.s32.totalorder %s31, 6
      %p285 = por %p283, %p284
      %p287 = scmp.ne.s32.totalorder %s272, %s286
      %p288 = scmp.eq.s32.totalorder %s31, 0
      %p289 = por %p287, %p288
      %p290 = scmp.le.s32.totalorder 1, %s25
      %p291 = scmp.lt.s32.totalorder %s25, 8
      %p292 = pnand %p290, %p291
      %p293 = pneg %p292
      // Predicated region
      $region9: #{tpu_custom_call.1} parent=5 // pred_check
        _
      $region10: #{tpu_custom_call.1} parent=5 // pred_check_branch
        %295 = sbr.rel (%p292) target = $region12
      $region11: #{tpu_custom_call.1} parent=5 // pred_region
        %s296 = ssub.s32 %s25, 1
        // Predicated region
        $region13: #{tpu_custom_call.1} parent=11 // pred_check
          %p297 = pneg %p46
        $region14: #{tpu_custom_call.1} parent=11 // pred_check_branch
          %299 = sbr.rel (%p297) target = $region16
        $region15: #{tpu_custom_call.1} parent=11 // pred_region
          %s301 = ssub.s32 256, 256
          %302 = vsyncadd [#allocation6], %s301
          %s303 = sshll.u32 [#allocation5], 4
          %s304 = int_to_ptr.vmem [resolvable:$true] %s303
          %309 = dma.hbm_to_vmem [thread:$0]  %s0, 256, %s304, [#allocation6], 128, 128, 8
        $region16: #{tpu_custom_call.1} parent=11 // pred_fallthru
          _
        // Predicated region
        $region17: #{tpu_custom_call.1} parent=11 // pred_check
          %p310 = pneg %p67
        $region18: #{tpu_custom_call.1} parent=11 // pred_check_branch
          %312 = sbr.rel (%p310) target = $region20
        $region19: #{tpu_custom_call.1} parent=11 // pred_region
          %s314 = ssub.s32 256, 256
          %315 = vsyncadd [#allocation9], %s314
          %s316 = sshll.u32 [#allocation8], 4
          %s317 = int_to_ptr.vmem [resolvable:$true] %s316
          %322 = dma.hbm_to_vmem [thread:$0]  %s1, 256, %s317, [#allocation9], 128, 128, 8
        $region20: #{tpu_custom_call.1} parent=11 // pred_fallthru
          _
        // Predicated region
        $region21: #{tpu_custom_call.1} parent=11 // pred_check
          %p323 = pneg %p114
        $region22: #{tpu_custom_call.1} parent=11 // pred_check_branch
          %325 = sbr.rel (%p323) target = $region24
        $region23: #{tpu_custom_call.1} parent=11 // pred_region
          _
        $region24: #{tpu_custom_call.1} parent=11 // pred_fallthru
          _
        // Predicated region
        $region25: #{tpu_custom_call.1} parent=11 // pred_check
          %p326 = pneg %p135
        $region26: #{tpu_custom_call.1} parent=11 // pred_check_branch
          %328 = sbr.rel (%p326) target = $region28
        $region27: #{tpu_custom_call.1} parent=11 // pred_region
          _
        $region28: #{tpu_custom_call.1} parent=11 // pred_fallthru
          _
        // Predicated region
        $region29: #{tpu_custom_call.1} parent=11 // pred_check
          %p329 = pneg %p156
        $region30: #{tpu_custom_call.1} parent=11 // pred_check_branch
          %331 = sbr.rel (%p329) target = $region32
        $region31: #{tpu_custom_call.1} parent=11 // pred_region
          %s333 = ssub.s32 512, 512
          %334 = vsyncadd [#allocation9], %s333
          %s335 = sshll.u32 [#allocation11], 4
          %s336 = int_to_ptr.vmem [resolvable:$true] %s335
          %341 = dma.hbm_to_vmem [thread:$0]  %s5, 512, %s336, [#allocation9], 128, 128, 8
        $region32: #{tpu_custom_call.1} parent=11 // pred_fallthru
          _
        // Predicated region
        $region33: #{tpu_custom_call.1} parent=11 // pred_check
          %p342 = pneg %p177
        $region34: #{tpu_custom_call.1} parent=11 // pred_check_branch
          %344 = sbr.rel (%p342) target = $region36
        $region35: #{tpu_custom_call.1} parent=11 // pred_region
          _
        $region36: #{tpu_custom_call.1} parent=11 // pred_fallthru
          _
        // Predicated region
        $region37: #{tpu_custom_call.1} parent=11 // pred_check
          %p345 = pneg %p198
        $region38: #{tpu_custom_call.1} parent=11 // pred_check_branch
          %347 = sbr.rel (%p345) target = $region40
        $region39: #{tpu_custom_call.1} parent=11 // pred_region
          _
        $region40: #{tpu_custom_call.1} parent=11 // pred_fallthru
          _
        // Predicated region
        $region41: #{tpu_custom_call.1} parent=11 // pred_check
          %p348 = pneg %p219
        $region42: #{tpu_custom_call.1} parent=11 // pred_check_branch
          %350 = sbr.rel (%p348) target = $region44
        $region43: #{tpu_custom_call.1} parent=11 // pred_region
          _
        $region44: #{tpu_custom_call.1} parent=11 // pred_fallthru
          _
        // Predicated region
        $region45: #{tpu_custom_call.1} parent=11 // pred_check
          %p351 = pneg %p240
        $region46: #{tpu_custom_call.1} parent=11 // pred_check_branch
          %353 = sbr.rel (%p351) target = $region48
        $region47: #{tpu_custom_call.1} parent=11 // pred_region
          %s355 = ssub.s32 1024, 1024
          %356 = vsyncadd [#allocation13], %s355
          %s357 = sshll.u32 [#allocation12], 4
          %s358 = int_to_ptr.vmem [resolvable:$true] %s357
          %363 = dma.hbm_to_vmem [thread:$0]  %s9, 1024, %s358, [#allocation13], 128, 128, 8
        $region48: #{tpu_custom_call.1} parent=11 // pred_fallthru
          _
      $region12: #{tpu_custom_call.1} parent=5 // pred_fallthru
        _
      %p364 = scmp.lt.s32.totalorder %s25, 7
      // Predicated region
      $region49: #{tpu_custom_call.1} parent=5 // pred_check
        %p365 = pneg %p364
      $region50: #{tpu_custom_call.1} parent=5 // pred_check_branch
        %367 = sbr.rel (%p365) target = $region52
      $region51: #{tpu_custom_call.1} parent=5 // pred_region
        // Predicated region
        $region53: #{tpu_custom_call.1} parent=51 // pred_check
          %p368 = pneg %p87
        $region54: #{tpu_custom_call.1} parent=51 // pred_check_branch
          %370 = sbr.rel (%p368) target = $region56
        $region55: #{tpu_custom_call.1} parent=51 // pred_region
          %s371 = sand.u32 %s25, 1
          %s372 = scalar_lea.sflag [#allocation6], %s371
          %s373 = sand.u32 %s77, 1
          %s374 = smul.addr %s373, 2
          %s375 = scalar_lea.vmem [#allocation10], %s374
          %s377 = ssub.s32 32, 32
          %378 = vsyncadd %s372, %s377
          %s379 = smul.addr %s25, 32
          %s380 = scalar_lea.hbm %s2, %s379
          %s382 = sshll.u32 %s375, 4
          %s383 = int_to_ptr.vmem [resolvable:$true] %s382
          %385 = dma.hbm_to_vmem [thread:$0]  %s380, 32, %s383, %s372
        $region56: #{tpu_custom_call.1} parent=51 // pred_fallthru
          _
      $region52: #{tpu_custom_call.1} parent=5 // pred_fallthru
        _
      %p386 = scmp.le.s32.totalorder 1, %s25
      %p387 = scmp.lt.s32.totalorder %s25, 8
      %p388 = pnand %p386, %p387
      %p389 = pneg %p388
      // Predicated region
      $region57: #{tpu_custom_call.1} parent=5 // pred_check
        _
      $region58: #{tpu_custom_call.1} parent=5 // pred_check_branch
        %391 = sbr.rel (%p388) target = $region60
      $region59: #{tpu_custom_call.1} parent=5 // pred_region
        %s392 = ssub.s32 %s25, 1
        // Predicated region
        $region61: #{tpu_custom_call.1} parent=59 // pred_check
          %p393 = pneg %p46
        $region62: #{tpu_custom_call.1} parent=59 // pred_check_branch
          %395 = sbr.rel (%p393) target = $region64
        $region63: #{tpu_custom_call.1} parent=59 // pred_region
          %396 = dma.done [#allocation6], 256
        $region64: #{tpu_custom_call.1} parent=59 // pred_fallthru
          _
        // Predicated region
        $region65: #{tpu_custom_call.1} parent=59 // pred_check
          %p397 = pneg %p67
        $region66: #{tpu_custom_call.1} parent=59 // pred_check_branch
          %399 = sbr.rel (%p397) target = $region68
        $region67: #{tpu_custom_call.1} parent=59 // pred_region
          %400 = dma.done [#allocation9], 256
        $region68: #{tpu_custom_call.1} parent=59 // pred_fallthru
          _
        %s401 = sand.u32 %s30, 1
        %s402 = scalar_lea.sflag [#allocation6], %s401
        %s403 = sand.u32 %s80, 1
        %s404 = smul.addr %s403, 2
        %s405 = scalar_lea.vmem [#allocation10], %s404
        // Predicated region
        $region69: #{tpu_custom_call.1} parent=59 // pred_check
          %p406 = pneg %p93
        $region70: #{tpu_custom_call.1} parent=59 // pred_check_branch
          %408 = sbr.rel (%p406) target = $region72
        $region71: #{tpu_custom_call.1} parent=59 // pred_region
          %409 = dma.done %s402, 32
        $region72: #{tpu_custom_call.1} parent=59 // pred_fallthru
          _
        // Predicated region
        $region73: #{tpu_custom_call.1} parent=59 // pred_check
          %p410 = pneg %p156
        $region74: #{tpu_custom_call.1} parent=59 // pred_check_branch
          %412 = sbr.rel (%p410) target = $region76
        $region75: #{tpu_custom_call.1} parent=59 // pred_region
          %413 = dma.done [#allocation9], 512
        $region76: #{tpu_custom_call.1} parent=59 // pred_fallthru
          _
        // Predicated region
        $region77: #{tpu_custom_call.1} parent=59 // pred_check
          %p414 = pneg %p240
        $region78: #{tpu_custom_call.1} parent=59 // pred_check_branch
          %416 = sbr.rel (%p414) target = $region80
        $region79: #{tpu_custom_call.1} parent=59 // pred_region
          %417 = dma.done [#allocation13], 1024
        $region80: #{tpu_custom_call.1} parent=59 // pred_fallthru
          _
        %p418 = pneg %p46
        %p419 = pneg %p43
        %p420 = pneg %p67
        %p421 = pneg %p64
        %s422 = sand.u32 %s30, 1
        %s423 = scalar_lea.sflag [#allocation6], %s422
        %s424 = sand.u32 %s80, 1
        %s425 = smul.addr %s424, 2
        %s426 = scalar_lea.vmem [#allocation10], %s425
        %p427 = pneg %p93
        %p428 = pneg %p90
        %p429 = pneg %p114
        %p430 = pneg %p111
        %p431 = pneg %p135
        %p432 = pneg %p132
        %p433 = pneg %p156
        %p434 = pneg %p153
        %p435 = pneg %p177
        %p436 = pneg %p174
        %p437 = pneg %p198
        %p438 = pneg %p195
        %p439 = pneg %p219
        %p440 = pneg %p216
        %p441 = pneg %p240
        %p442 = pneg %p237
        %p443 = pneg %p261
        %p444 = pneg %p258
        %p445 = pneg %p282
        %p446 = pneg %p279
        %p447 = scmp.eq.s32.totalorder %s30, 0
        // Predicated region
        $region81: #{tpu_custom_call.1} parent=59 // pred_check
          %p448 = pneg %p447
        $region82: #{tpu_custom_call.1} parent=59 // pred_check_branch
          %450 = sbr.rel (%p448) target = $region84
        $region83: #{tpu_custom_call.1} parent=59 // pred_region
          %v451 = vld [vmem:[%s3] sm:$0x3]
          %vm452 = vcmask 254976
          %453 = vst.msk [vmem:[#allocation2] sm:$0x3] %vm452, %v451
          %v454 = vld [vmem:[%s4] sm:$0x3]
          %455 = vst.msk [vmem:[#allocation3] sm:$0x3] %vm452, %v454
        $region84: #{tpu_custom_call.1} parent=59 // pred_fallthru
          _
        %v456 = vld [vmem:[#allocation5] sm:$0xff]
        %v457 = vld [vmem:[#allocation5 + $0x8] sm:$0xff]
        %v458 = vld [vmem:[#allocation2] sm:$0x3]
        %v459 = vld [vmem:[#allocation3] sm:$0x3]
        %v460 = vld [vmem:[#allocation11] sm:$0xff]
        %v461 = vld [vmem:[#allocation11 + $0x8] sm:$0xff]
        %v462 = vld [vmem:[#allocation11 + $0x10] sm:$0xff]
        %v463 = vld [vmem:[#allocation11 + $0x18] sm:$0xff]
        %v464 = vld [vmem:[%s6] sm:$0x1]
        %v466 = vlaneseq
        %v467 = vshrl.u32 %v466, 7
        %v468 = vsub.s32 0, %v467
        %v469 = vrot.slane %v464, %v468
        %vm471 = vcmask 261120
        %v473 = vsel %vm471, %v458, 0
        %475 = vmatprep.subr.mxu0 0.0
        %476 = vmatpush1.msra.mxu0 0.0
        %477 = vmatprep.subr.mxu0 0.0
        %478 = vmatpush1.msra.mxu0 0.0
        %479 = vmatprep.subr.mxu0 0.0
        %480 = vmatpush1.msra.mxu0 0.0
        %481 = vmatprep.subr.mxu0 0.0
        %482 = vmatpush1.msra.mxu0 0.0
        %483 = vmatprep.subr.mxu0 0.0
        %484 = vmatpush1.msra.mxu0 0.0
        %485 = vmatprep.subr.mxu0 0.0
        %486 = vmatpush1.msra.mxu0 0.0
        %487 = vmatprep.subr.mxu0 0.0
        %488 = vmatpush1.msra.mxu0 0.0
        %489 = vmatprep.subr.mxu0 0.0
        %490 = vmatpush1.msra.mxu0 0.0
        %491 = vmatprep.subr.mxu0 0.0
        %492 = vmatpush1.msra.mxu0 0.0
        %493 = vmatprep.subr.mxu0 0.0
        %494 = vmatpush1.msra.mxu0 0.0
        %495 = vmatprep.subr.mxu0 0.0
        %496 = vmatpush1.msra.mxu0 0.0
        %497 = vmatprep.subr.mxu0 0.0
        %498 = vmatpush1.msra.mxu0 0.0
        %499 = vmatprep.subr.mxu0 0.0
        %500 = vmatpush1.msra.mxu0 %v463
        %501 = vmatprep.subr.mxu0 0.0
        %502 = vmatpush1.msra.mxu0 %v462
        %503 = vmatprep.subr.mxu0 0.0
        %504 = vmatpush1.msra.mxu0 %v461
        %505 = vmatprep.subr.mxu0 0.0
        %506 = vmatpush1.msra.mxu0 %v460
        %507 = vmatprep.subr.mxu0 0.0
        %508 = vmatpush2.msra.mxu0 0.0
        %509 = vmatprep.subr.mxu0 0.0
        %510 = vmatpush2.msra.mxu0 0.0
        %511 = vmatprep.subr.mxu0 0.0
        %512 = vmatpush2.msra.mxu0 0.0
        %513 = vmatprep.subr.mxu0 0.0
        %514 = vmatpush2.msra.mxu0 0.0
        %515 = vmatprep.subr.mxu0 0.0
        %516 = vmatpush2.msra.mxu0 0.0
        %517 = vmatprep.subr.mxu0 0.0
        %518 = vmatpush2.msra.mxu0 0.0
        %519 = vmatprep.subr.mxu0 0.0
        %520 = vmatpush2.msra.mxu0 0.0
        %521 = vmatprep.subr.mxu0 0.0
        %522 = vmatpush2.msra.mxu0 0.0
        %523 = vmatprep.subr.mxu0 0.0
        %524 = vmatpush2.msra.mxu0 0.0
        %525 = vmatprep.subr.mxu0 0.0
        %526 = vmatpush2.msra.mxu0 0.0
        %527 = vmatprep.subr.mxu0 0.0
        %528 = vmatpush2.msra.mxu0 0.0
        %529 = vmatprep.subr.mxu0 0.0
        %530 = vmatpush2.msra.mxu0 0.0
        %531 = vmatprep.subr.mxu0 0.0
        %532 = vmatpush2.msra.mxu0 0.0
        %533 = vmatprep.subr.mxu0 0.0
        %534 = vmatpush2.msra.mxu0 0.0
        %535 = vmatprep.subr.mxu0 0.0
        %536 = vmatpush2.msra.mxu0 0.0
        %537 = vmatprep.subr.mxu0 0.0
        %538 = vmatpush2.msra.mxu0 0.0
        %539 = vmatprep.mubr.f32.mxu0 0.0
        %540 = vmatmul.mubr.f32.gmra.mxu0 %v473
        %v541 = vpop.f32.mrf.mxu0
        %v542 = vadd.f32 %v469, %v541
        %v543 = vpop.f32.mrf.mxu0
        %544 = vdwg.mxu0
        %v545 = vld [vmem:[#allocation8] sm:$0xff]
        %v546 = vld [vmem:[#allocation8 + $0x8] sm:$0xff]
        %v549 = vunpack.c.l.s4 1966171168
        %v550 = vunpack.c.0.s8 %v549
        %v551 = vlaneseq
        %v552 = vshrl.u32 %v551, 7
        %v553 = vsub.s32 %v550, %v552
        %v554 = vrot.slane %v542, %v553
        %v555 = vcombine.high %v554, %v554
        %v557 = vunpack.c.l.s4 1966171168
        %v558 = vunpack.c.0.s8 %v557
        %v559 = vlaneseq
        %v560 = vshrl.u32 %v559, 7
        %v561 = vsub.s32 %v558, %v560
        %v562 = vrot.slane %v554, %v561
        %v564 = vunpack.c.l.s4 1966171168
        %v565 = vunpack.c.0.s8 %v564
        %v566 = vlaneseq
        %v567 = vshrl.u32 %v566, 7
        %v568 = vsub.s32 %v565, %v567
        %v569 = vrot.slane %v555, %v568
        %v570 = vlaneseq
        %v571 = vshrl.u32 %v570, 7
        %v572 = vsub.s32 0, %v571
        %v573 = vrot.slane %v562, %v572
        %v574 = vlaneseq
        %v575 = vshrl.u32 %v574, 7
        %v576 = vsub.s32 0, %v575
        %v577 = vrot.slane %v569, %v576
        %v580 = vadd.f32 %v545, %v573
        %v581 = vadd.f32 %v546, %v577
        %v582 = vtanh.pop %v580
        %v583 = vtanh.pop %v581
        %v584 = vld [vmem:[%s7] sm:$0x1]
        %v586 = vlaneseq
        %v587 = vshrl.u32 %v586, 7
        %v588 = vsub.s32 0, %v587
        %v589 = vrot.slane %v584, %v588
        %v591 = vmul.f32 %v582, %v589
        %v592 = vmul.f32 %v583, %v589
        %v593 = vsel %vm471, %v591, 0.0
        %594 = vadd.xlane.f32.xlu0 %v593
        %v595 = vpop.xlane.xlu0 %594
        %v596 = vsel %vm471, %v592, 0.0
        %597 = vadd.xlane.f32.xlu0 %v596
        %v598 = vpop.xlane.xlu0 %597
        %v599 = vld [vmem:[#allocation4] sm:$0x1]
        %v601 = vlaneseq
        %v602 = vshrl.u32 %v601, 7
        %v603 = vsub.s32 0, %v602
        %v604 = vrot.slane %v599, %v603
        %605 = vset.pattern.permute.xlu0 0
        %606 = vperm.xlu0 %605, %v604
        %v607 = vpop.permute.xlu0 %606
        %v609 = vadd.f32 %v595, %v607
        %v610 = vadd.f32 %v598, %v607
        %v613 = vlaneseq
        %v614 = vand.u32 %v613, 127
        %v615 = vlaneseq
        %v616 = vshrl.u32 %v615, 7
        %v617 = vsub.s32 %v614, %v616
        %v618 = vrot.slane %v609, %v617
        %v619 = vlaneseq
        %v620 = vshrl.u32 %v619, 7
        %v621 = vsub.s32 %v614, %v620
        %v622 = vrot.slane %v610, %v621
        %vm623 = vcmask 1041409
        %v624 = vsel %vm623, %v622, %v618
        %vm626 = vcmask 58368
        %v627 = vsel %vm626, %v624, -inf
        %628 = vmax.xlane.f32.xlu0 %v627
        %v629 = vpop.xlane.xlu0 %628
        %v631 = vlaneseq
        %v632 = vshrl.u32 %v631, 7
        %v633 = vsub.s32 0, %v632
        %v634 = vrot.slane %v629, %v633
        %v635 = vlaneseq
        %v636 = vshrl.u32 %v635, 7
        %v637 = vsub.s32 1, %v636
        %v638 = vrot.slane %v629, %v637
        %v641 = vsub.f32 %v609, %v634
        %v642 = vsub.f32 %v610, %v638
        %v643 = vmul.f32 %v641, 1.442695
        %v644 = vpow.pop %v643
        %v645 = vmul.f32 %v642, 1.442695
        %v646 = vpow.pop %v645
        %649 = vset.pattern.permute.xlu0 0
        %650 = vperm.xlu0 %649, %v644
        %v651 = vpop.permute.xlu0 %650
        %652 = vset.pattern.permute.xlu0 0
        %653 = vperm.xlu0 %652, %v646
        %v654 = vpop.permute.xlu0 %653
        %v655 = vlaneseq
        %v656 = vshrl.u32 %v655, 7
        %v657 = vsub.s32 %v614, %v656
        %v658 = vrot.slane %v651, %v657
        %v659 = vlaneseq
        %v660 = vshrl.u32 %v659, 7
        %v661 = vsub.s32 %v614, %v660
        %v662 = vrot.slane %v654, %v661
        %v663 = vsel %vm623, %v662, %v658
        %v665 = vsel %vm626, %v663, 0.0
        %666 = vadd.xlane.f32.xlu0 %v665
        %v667 = vpop.xlane.xlu0 %666
        %v669 = vlaneseq
        %v670 = vshrl.u32 %v669, 7
        %v671 = vsub.s32 0, %v670
        %v672 = vrot.slane %v667, %v671
        %v673 = vlaneseq
        %v674 = vshrl.u32 %v673, 7
        %v675 = vsub.s32 1, %v674
        %v676 = vrot.slane %v667, %v675
        %v679 = vrcp.pop %v672
        %v680 = vmul.f32 %v644, %v679
        %v681 = vrcp.pop %v676
        %v682 = vmul.f32 %v646, %v681
        %684 = vset.pattern.permute.xlu0 0
        %685 = vperm.xlu0 %684, %v680
        %v686 = vpop.permute.xlu0 %685
        %v687 = vlaneseq
        %v688 = vshrl.u32 %v687, 7
        %v689 = vsub.s32 %v614, %v688
        %v690 = vrot.slane %v686, %v689
        %vm691 = vcmask 64512
        %v692 = vsel %vm691, %v690, 0
        %694 = vmatprep.subr.mxu0 0.0
        %695 = vmatpush1.msra.mxu0 0.0
        %696 = vmatprep.subr.mxu0 0.0
        %697 = vmatpush1.msra.mxu0 0.0
        %698 = vmatprep.subr.mxu0 0.0
        %699 = vmatpush1.msra.mxu0 0.0
        %700 = vmatprep.subr.mxu0 0.0
        %701 = vmatpush1.msra.mxu0 0.0
        %702 = vmatprep.subr.mxu0 0.0
        %703 = vmatpush1.msra.mxu0 0.0
        %704 = vmatprep.subr.mxu0 0.0
        %705 = vmatpush1.msra.mxu0 0.0
        %706 = vmatprep.subr.mxu0 0.0
        %707 = vmatpush1.msra.mxu0 0.0
        %708 = vmatprep.subr.mxu0 0.0
        %709 = vmatpush1.msra.mxu0 0.0
        %710 = vmatprep.subr.mxu0 0.0
        %711 = vmatpush1.msra.mxu0 0.0
        %712 = vmatprep.subr.mxu0 0.0
        %713 = vmatpush1.msra.mxu0 0.0
        %714 = vmatprep.subr.mxu0 0.0
        %715 = vmatpush1.msra.mxu0 0.0
        %716 = vmatprep.subr.mxu0 0.0
        %717 = vmatpush1.msra.mxu0 0.0
        %718 = vmatprep.subr.mxu0 0.0
        %719 = vmatpush1.msra.mxu0 0.0
        %720 = vmatprep.subr.mxu0 0.0
        %721 = vmatpush1.msra.mxu0 0.0
        %722 = vmatprep.subr.mxu0 0.0
        %723 = vmatpush1.msra.mxu0 0.0
        %724 = vmatprep.subr.mxu0 0.0
        %725 = vmatpush1.msra.mxu0 %v456
        %726 = vmatprep.subr.mxu0 0.0
        %727 = vmatpush2.msra.mxu0 0.0
        %728 = vmatprep.subr.mxu0 0.0
        %729 = vmatpush2.msra.mxu0 0.0
        %730 = vmatprep.subr.mxu0 0.0
        %731 = vmatpush2.msra.mxu0 0.0
        %732 = vmatprep.subr.mxu0 0.0
        %733 = vmatpush2.msra.mxu0 0.0
        %734 = vmatprep.subr.mxu0 0.0
        %735 = vmatpush2.msra.mxu0 0.0
        %736 = vmatprep.subr.mxu0 0.0
        %737 = vmatpush2.msra.mxu0 0.0
        %738 = vmatprep.subr.mxu0 0.0
        %739 = vmatpush2.msra.mxu0 0.0
        %740 = vmatprep.subr.mxu0 0.0
        %741 = vmatpush2.msra.mxu0 0.0
        %742 = vmatprep.subr.mxu0 0.0
        %743 = vmatpush2.msra.mxu0 0.0
        %744 = vmatprep.subr.mxu0 0.0
        %745 = vmatpush2.msra.mxu0 0.0
        %746 = vmatprep.subr.mxu0 0.0
        %747 = vmatpush2.msra.mxu0 0.0
        %748 = vmatprep.subr.mxu0 0.0
        %749 = vmatpush2.msra.mxu0 0.0
        %750 = vmatprep.subr.mxu0 0.0
        %751 = vmatpush2.msra.mxu0 0.0
        %752 = vmatprep.subr.mxu0 0.0
        %753 = vmatpush2.msra.mxu0 0.0
        %754 = vmatprep.subr.mxu0 0.0
        %755 = vmatpush2.msra.mxu0 0.0
        %756 = vmatprep.subr.mxu0 0.0
        %757 = vmatpush2.msra.mxu0 0.0
        %758 = vmatprep.mubr.f32.mxu0 0.0
        %759 = vmatmul.mubr.f32.gmra.mxu0 %v692
        %v760 = vpop.f32.mrf.mxu0
        %v761 = vadd.f32 0.0, %v760
        %v762 = vpop.f32.mrf.mxu0
        %763 = vdwg.mxu0
        %765 = vset.pattern.permute.xlu0 0
        %766 = vperm.xlu0 %765, %v682
        %v767 = vpop.permute.xlu0 %766
        %v768 = vlaneseq
        %v769 = vshrl.u32 %v768, 7
        %v770 = vsub.s32 %v614, %v769
        %v771 = vrot.slane %v767, %v770
        %v772 = vsel %vm691, %v771, 0
        %774 = vmatprep.subr.mxu0 0.0
        %775 = vmatpush1.msra.mxu0 0.0
        %776 = vmatprep.subr.mxu0 0.0
        %777 = vmatpush1.msra.mxu0 0.0
        %778 = vmatprep.subr.mxu0 0.0
        %779 = vmatpush1.msra.mxu0 0.0
        %780 = vmatprep.subr.mxu0 0.0
        %781 = vmatpush1.msra.mxu0 0.0
        %782 = vmatprep.subr.mxu0 0.0
        %783 = vmatpush1.msra.mxu0 0.0
        %784 = vmatprep.subr.mxu0 0.0
        %785 = vmatpush1.msra.mxu0 0.0
        %786 = vmatprep.subr.mxu0 0.0
        %787 = vmatpush1.msra.mxu0 0.0
        %788 = vmatprep.subr.mxu0 0.0
        %789 = vmatpush1.msra.mxu0 0.0
        %790 = vmatprep.subr.mxu0 0.0
        %791 = vmatpush1.msra.mxu0 0.0
        %792 = vmatprep.subr.mxu0 0.0
        %793 = vmatpush1.msra.mxu0 0.0
        %794 = vmatprep.subr.mxu0 0.0
        %795 = vmatpush1.msra.mxu0 0.0
        %796 = vmatprep.subr.mxu0 0.0
        %797 = vmatpush1.msra.mxu0 0.0
        %798 = vmatprep.subr.mxu0 0.0
        %799 = vmatpush1.msra.mxu0 0.0
        %800 = vmatprep.subr.mxu0 0.0
        %801 = vmatpush1.msra.mxu0 0.0
        %802 = vmatprep.subr.mxu0 0.0
        %803 = vmatpush1.msra.mxu0 0.0
        %804 = vmatprep.subr.mxu0 0.0
        %805 = vmatpush1.msra.mxu0 %v457
        %806 = vmatprep.subr.mxu0 0.0
        %807 = vmatpush2.msra.mxu0 0.0
        %808 = vmatprep.subr.mxu0 0.0
        %809 = vmatpush2.msra.mxu0 0.0
        %810 = vmatprep.subr.mxu0 0.0
        %811 = vmatpush2.msra.mxu0 0.0
        %812 = vmatprep.subr.mxu0 0.0
        %813 = vmatpush2.msra.mxu0 0.0
        %814 = vmatprep.subr.mxu0 0.0
        %815 = vmatpush2.msra.mxu0 0.0
        %816 = vmatprep.subr.mxu0 0.0
        %817 = vmatpush2.msra.mxu0 0.0
        %818 = vmatprep.subr.mxu0 0.0
        %819 = vmatpush2.msra.mxu0 0.0
        %820 = vmatprep.subr.mxu0 0.0
        %821 = vmatpush2.msra.mxu0 0.0
        %822 = vmatprep.subr.mxu0 0.0
        %823 = vmatpush2.msra.mxu0 0.0
        %824 = vmatprep.subr.mxu0 0.0
        %825 = vmatpush2.msra.mxu0 0.0
        %826 = vmatprep.subr.mxu0 0.0
        %827 = vmatpush2.msra.mxu0 0.0
        %828 = vmatprep.subr.mxu0 0.0
        %829 = vmatpush2.msra.mxu0 0.0
        %830 = vmatprep.subr.mxu0 0.0
        %831 = vmatpush2.msra.mxu0 0.0
        %832 = vmatprep.subr.mxu0 0.0
        %833 = vmatpush2.msra.mxu0 0.0
        %834 = vmatprep.subr.mxu0 0.0
        %835 = vmatpush2.msra.mxu0 0.0
        %836 = vmatprep.subr.mxu0 0.0
        %837 = vmatpush2.msra.mxu0 0.0
        %838 = vmatprep.mubr.f32.mxu0 0.0
        %839 = vmatmul.mubr.f32.gmra.mxu0 %v772
        %v840 = vpop.f32.mrf.mxu0
        %v841 = vadd.f32 0.0, %v840
        %v842 = vpop.f32.mrf.mxu0
        %843 = vdwg.mxu0
        %v846 = vrot.slane %v841, 7
        %v847 = vsel %vm623, %v846, %v761
        %849 = vrot.lane.b32.xlu0 %v458, 32
        %v850 = vpop.permute.xlu0 %849
        %v852 = vsel %vm471, %v847, %v850
        %v853 = vld [vmem:[%s405] sm:$0x3]
        %v854 = vld [vmem:[#allocation12] sm:$0xff]
        %v855 = vld [vmem:[#allocation12 + $0x8] sm:$0xff]
        %v856 = vld [vmem:[#allocation12 + $0x10] sm:$0xff]
        %v857 = vld [vmem:[#allocation12 + $0x18] sm:$0xff]
        %v858 = vld [vmem:[#allocation12 + $0x20] sm:$0xff]
        %v859 = vld [vmem:[#allocation12 + $0x28] sm:$0xff]
        %v860 = vld [vmem:[#allocation12 + $0x30] sm:$0xff]
        %v861 = vld [vmem:[#allocation12 + $0x38] sm:$0xff]
        %vm862 = vcmask 523264
        %v864 = vsel %vm862, %v852, 0
        %866 = vmatprep.subr.mxu0 0.0
        %867 = vmatpush1.msra.mxu0 0.0
        %868 = vmatprep.subr.mxu0 0.0
        %869 = vmatpush1.msra.mxu0 0.0
        %870 = vmatprep.subr.mxu0 0.0
        %871 = vmatpush1.msra.mxu0 0.0
        %872 = vmatprep.subr.mxu0 0.0
        %873 = vmatpush1.msra.mxu0 0.0
        %874 = vmatprep.subr.mxu0 0.0
        %875 = vmatpush1.msra.mxu0 0.0
        %876 = vmatprep.subr.mxu0 0.0
        %877 = vmatpush1.msra.mxu0 0.0
        %878 = vmatprep.subr.mxu0 0.0
        %879 = vmatpush1.msra.mxu0 0.0
        %880 = vmatprep.subr.mxu0 0.0
        %881 = vmatpush1.msra.mxu0 0.0
        %882 = vmatprep.subr.mxu0 0.0
        %883 = vmatpush1.msra.mxu0 %v861
        %884 = vmatprep.subr.mxu0 0.0
        %885 = vmatpush1.msra.mxu0 %v860
        %886 = vmatprep.subr.mxu0 0.0
        %887 = vmatpush1.msra.mxu0 %v859
        %888 = vmatprep.subr.mxu0 0.0
        %889 = vmatpush1.msra.mxu0 %v858
        %890 = vmatprep.subr.mxu0 0.0
        %891 = vmatpush1.msra.mxu0 %v857
        %892 = vmatprep.subr.mxu0 0.0
        %893 = vmatpush1.msra.mxu0 %v856
        %894 = vmatprep.subr.mxu0 0.0
        %895 = vmatpush1.msra.mxu0 %v855
        %896 = vmatprep.subr.mxu0 0.0
        %897 = vmatpush1.msra.mxu0 %v854
        %898 = vmatprep.subr.mxu0 0.0
        %899 = vmatpush2.msra.mxu0 0.0
        %900 = vmatprep.subr.mxu0 0.0
        %901 = vmatpush2.msra.mxu0 0.0
        %902 = vmatprep.subr.mxu0 0.0
        %903 = vmatpush2.msra.mxu0 0.0
        %904 = vmatprep.subr.mxu0 0.0
        %905 = vmatpush2.msra.mxu0 0.0
        %906 = vmatprep.subr.mxu0 0.0
        %907 = vmatpush2.msra.mxu0 0.0
        %908 = vmatprep.subr.mxu0 0.0
        %909 = vmatpush2.msra.mxu0 0.0
        %910 = vmatprep.subr.mxu0 0.0
        %911 = vmatpush2.msra.mxu0 0.0
        %912 = vmatprep.subr.mxu0 0.0
        %913 = vmatpush2.msra.mxu0 0.0
        %914 = vmatprep.subr.mxu0 0.0
        %915 = vmatpush2.msra.mxu0 0.0
        %916 = vmatprep.subr.mxu0 0.0
        %917 = vmatpush2.msra.mxu0 0.0
        %918 = vmatprep.subr.mxu0 0.0
        %919 = vmatpush2.msra.mxu0 0.0
        %920 = vmatprep.subr.mxu0 0.0
        %921 = vmatpush2.msra.mxu0 0.0
        %922 = vmatprep.subr.mxu0 0.0
        %923 = vmatpush2.msra.mxu0 0.0
        %924 = vmatprep.subr.mxu0 0.0
        %925 = vmatpush2.msra.mxu0 0.0
        %926 = vmatprep.subr.mxu0 0.0
        %927 = vmatpush2.msra.mxu0 0.0
        %928 = vmatprep.subr.mxu0 0.0
        %929 = vmatpush2.msra.mxu0 0.0
        %930 = vmatprep.mubr.f32.mxu0 0.0
        %931 = vmatmul.mubr.f32.gmra.mxu0 %v864
        %v932 = vpop.f32.mrf.mxu0
        %v933 = vadd.f32 0.0, %v932
        %v934 = vpop.f32.mrf.mxu0
        %935 = vdwg.mxu0
        %v936 = vadd.f32 %v853, %v933
        %v937 = vxor.u32 %v936, 2147483648
        %v938 = vmul.f32 %v937, 1.442695
        %v939 = vpow.pop %v938
        %v940 = vadd.f32 %v939, 1.0
        %v941 = vrcp.pop %v940
        %v942 = vmul.f32 1.0, %v941
        %v943 = vtanh.pop %v936
        %945 = vrot.lane.b32.xlu0 %v459, 32
        %v946 = vpop.permute.xlu0 %945
        %v948 = vmul.f32 %v942, %v946
        %950 = vrot.lane.b32.xlu0 %v943, 64
        %v951 = vpop.permute.xlu0 %950
        %v953 = vmul.f32 %v942, %v951
        %955 = vrot.lane.b32.xlu0 %v953, 32
        %v956 = vpop.permute.xlu0 %955
        %v958 = vadd.f32 %v948, %v956
        %v959 = vtanh.pop %v958
        %961 = vrot.lane.b32.xlu0 %v959, 64
        %v962 = vpop.permute.xlu0 %961
        %v964 = vmul.f32 %v942, %v962
        %966 = vrot.lane.b32.xlu0 %v964, 32
        %v967 = vpop.permute.xlu0 %966
        %vm969 = vcmask 254976
        %970 = vst.msk [vmem:[#allocation2] sm:$0x3] %vm969, %v967
        %972 = vrot.lane.b32.xlu0 %v958, 96
        %v973 = vpop.permute.xlu0 %972
        %975 = vst.msk [vmem:[#allocation3] sm:$0x3] %vm969, %v973
        %s976 = smul.u32 %s30, 2
        %s977 = scalar_lea.vmem [#allocation14], %s976
        %978 = vst.msk [vmem:[%s977] sm:$0x3] %vm969, %v967
        %v979 = vsel %vm623, %v771, %v690
        %s981 = scalar_lea.vmem [#allocation15], %s976
        %982 = vst.msk [vmem:[%s981] sm:$0x3] %vm626, %v979
        // Predicated region
        $region85: #{tpu_custom_call.1} parent=59 // pred_check
          %p983 = pneg %p258
        $region86: #{tpu_custom_call.1} parent=59 // pred_check_branch
          %985 = sbr.rel (%p983) target = $region88
        $region87: #{tpu_custom_call.1} parent=59 // pred_region
          %s987 = ssub.s32 224, 224
          %988 = vsyncadd [#allocation7], %s987
          %s989 = sshll.u32 [#allocation14], 4
          %s990 = int_to_ptr.vmem [resolvable:$true] %s989
          %995 = dma.vmem_to_hbm [thread:$0]  %s990, 224, %s10, [#allocation7], 32, 32, 2
        $region88: #{tpu_custom_call.1} parent=59 // pred_fallthru
          _
        // Predicated region
        $region89: #{tpu_custom_call.1} parent=59 // pred_check
          %p996 = pneg %p279
        $region90: #{tpu_custom_call.1} parent=59 // pred_check_branch
          %998 = sbr.rel (%p996) target = $region92
        $region91: #{tpu_custom_call.1} parent=59 // pred_region
          %s1000 = ssub.s32 224, 224
          %1001 = vsyncadd [#allocation16], %s1000
          %s1002 = sshll.u32 [#allocation15], 4
          %s1003 = int_to_ptr.vmem [resolvable:$true] %s1002
          %1008 = dma.vmem_to_hbm [thread:$0]  %s1003, 224, %s11, [#allocation16], 32, 32, 2
        $region92: #{tpu_custom_call.1} parent=59 // pred_fallthru
          _
        // Predicated region
        $region93: #{tpu_custom_call.1} parent=59 // pred_check
          %p1009 = pneg %p258
        $region94: #{tpu_custom_call.1} parent=59 // pred_check_branch
          %1011 = sbr.rel (%p1009) target = $region96
        $region95: #{tpu_custom_call.1} parent=59 // pred_region
          %1012 = dma.done [#allocation7], 224
        $region96: #{tpu_custom_call.1} parent=59 // pred_fallthru
          _
        // Predicated region
        $region97: #{tpu_custom_call.1} parent=59 // pred_check
          %p1013 = pneg %p279
        $region98: #{tpu_custom_call.1} parent=59 // pred_check_branch
          %1015 = sbr.rel (%p1013) target = $region100
        $region99: #{tpu_custom_call.1} parent=59 // pred_region
          %1016 = dma.done [#allocation16], 224
        $region100: #{tpu_custom_call.1} parent=59 // pred_fallthru
          _
      $region60: #{tpu_custom_call.1} parent=5 // pred_fallthru
        _
      %p1017 = scmp.le.s32.totalorder 2, %s25
      // Predicated region
      $region101: #{tpu_custom_call.1} parent=5 // pred_check
        %p1018 = pneg %p1017
      $region102: #{tpu_custom_call.1} parent=5 // pred_check_branch
        %1020 = sbr.rel (%p1018) target = $region104
      $region103: #{tpu_custom_call.1} parent=5 // pred_region
        %s1021 = ssub.s32 %s25, 2
      $region104: #{tpu_custom_call.1} parent=5 // pred_fallthru
        _
    $region6: #{tpu_custom_call.1} parent=1 // loop_footer
      %s29 = sadd.s32 1, %s25
    $region7: #{tpu_custom_call.1} parent=1 // loop_footer_branch
      %24 = sbr.rel target = $region3
    $region8: #{tpu_custom_call.1} parent=1 // loop_exit
      _
    %1022 = vsyncpa [#allocation6], 1
    %s1023 = scalar_lea.sflag [#allocation6], 1
    %1024 = vsyncpa %s1023, 1
    %1025 = vsyncpa [#allocation9], 1
    %1026 = vsyncpa [#allocation13], 1
    %1027 = vsyncpa [#allocation7], 1
    %s1028 = scalar_lea.sflag [#allocation7], 1
    %1029 = vsyncpa %s1028, 1
    %1030 = vsyncpa [#allocation16], 1

</llo_original>
